<compile_context>
chip_gen: v7x
topology: tpu7x:2x2x1
jax: 0.10.0
libtpu: 0.0.40
codegen_flags: <defaults>
</compile_context>

<pallas_src>
import jax
import jax.numpy as jnp
from jax.experimental import pallas as pl
from jax.experimental.pallas import tpu as pltpu

# A few concurrent DMA descriptors are enough to saturate HBM bandwidth on
# v5e / v6e / v7x; more only adds descriptor-issue overhead.
_MAX_INFLIGHT_DMAS = 4


def _chunk_bounds(rows: int, n_chunks: int):
    """Static (start, size) pairs covering [0, rows) in <= n_chunks pieces."""
    n_chunks = max(1, min(n_chunks, rows))
    chunk = -(-rows // n_chunks)  # ceil-div
    bounds = []
    start = 0
    while start < rows:
        size = min(chunk, rows - start)
        bounds.append((start, size))
        start += size
    return tuple(bounds)


def _make_hbm_copy_kernel(bounds):
    """Kernel issuing one HBM->HBM DMA per static chunk, all in flight."""

    def kernel(x_hbm, o_hbm, sem):
        copies = []
        for i, (start, size) in enumerate(bounds):
            cp = pltpu.make_async_copy(
                x_hbm.at[pl.ds(start, size)],
                o_hbm.at[pl.ds(start, size)],
                sem.at[i],
            )
            cp.start()
            copies.append(cp)
        # All chunks are now in flight; wait for completion.
        for cp in copies:
            cp.wait()

    return kernel


def cnn_forward(x: jax.Array) -> jax.Array:
    """Forward pass of the PyTorch CNN module (identity) — zero-copy path."""
    return x


def cnn_forward_pallas(x: jax.Array) -> jax.Array:
    """Identity materialized into a fresh buffer via direct HBM->HBM DMA."""
    total = x.size

    # Layout plumbing in the wrapper (free): present a lane-dense 2-D slab
    # when the size allows it; otherwise keep the original shape.  Either way
    # the DMA chunks are contiguous leading-dim slices, so dtype sublane
    # packing / (8,128) tiling constraints never apply (no VMEM involved).
    work = None
    for lanes in (4096, 2048, 1024, 512, 256, 128):
        if total % lanes == 0:
            work = x.reshape(total // lanes, lanes)
            break
    if work is None:
        work = x if x.ndim >= 1 else x.reshape(1)

    rows = work.shape[0]
    bounds = _chunk_bounds(rows, _MAX_INFLIGHT_DMAS)

    out = pl.pallas_call(
        _make_hbm_copy_kernel(bounds),
        out_shape=jax.ShapeDtypeStruct(work.shape, work.dtype),
        in_specs=[pl.BlockSpec(memory_space=pl.ANY)],
        out_specs=pl.BlockSpec(memory_space=pl.ANY),
        scratch_shapes=[pltpu.SemaphoreType.DMA((len(bounds),))],
    )(work)

    return out.reshape(x.shape)


if __name__ == "__main__":
    key = jax.random.PRNGKey(0)
    # Small NCHW input consistent with a CNN-style module.
    x = jax.random.normal(key, (2, 4, 16, 16), dtype=jnp.float32)

    # True identity path (what the module's forward actually is).
    y_fast = cnn_forward(x)

    # Pallas HBM->HBM copy kernel path (run once, as requested).
    y = cnn_forward_pallas(x)
    jax.block_until_ready(y)

    assert y.shape == x.shape and y.dtype == x.dtype
    assert bool(jnp.all(y == x))
    assert bool(jnp.all(y_fast == x))
    print("KERNEL_OK")
</pallas_src>

<mosaic_0001>
module attributes {stable_mosaic.version = 11 : i64} {
  func.func @kernel(%arg0: memref<1x2048xf32, #tpu.memory_space<any>>, %arg1: memref<1x2048xf32, #tpu.memory_space<any>>, %arg2: memref<1x!tpu.dma_semaphore, #tpu.memory_space<semaphore_mem>>) attributes {dimension_semantics = [], scalar_prefetch = 0 : i64, scratch_operands = 1 : i64, tpu.core_type = #tpu.core_type<tc>} {
    %c0_i32 = arith.constant 0 : i32
    %c0_i32_0 = arith.constant 0 : i32
    %c0_i32_1 = arith.constant 0 : i32
    %0 = tpu.memref_slice %arg0[%c0_i32_0, %c0_i32_1] : memref<1x2048xf32, #tpu.memory_space<any>> -> memref<1x2048xf32, #tpu.memory_space<any>>
    %c0_i32_2 = arith.constant 0 : i32
    %c0_i32_3 = arith.constant 0 : i32
    %1 = tpu.memref_slice %arg1[%c0_i32_2, %c0_i32_3] : memref<1x2048xf32, #tpu.memory_space<any>> -> memref<1x2048xf32, #tpu.memory_space<any>>
    %2 = tpu.memref_slice %arg2[%c0_i32] : memref<1x!tpu.dma_semaphore, #tpu.memory_space<semaphore_mem>> -> memref<1x!tpu.dma_semaphore, #tpu.memory_space<semaphore_mem>>
    %3 = tpu.memref_squeeze %2 : memref<1x!tpu.dma_semaphore, #tpu.memory_space<semaphore_mem>> -> memref<!tpu.dma_semaphore, #tpu.memory_space<semaphore_mem>>
    tpu.enqueue_dma source(%0 : memref<1x2048xf32, #tpu.memory_space<any>>) target(%1 : memref<1x2048xf32, #tpu.memory_space<any>>) target_semaphore(%3 : memref<!tpu.dma_semaphore, #tpu.memory_space<semaphore_mem>>)
    %c0_i32_4 = arith.constant 0 : i32
    %c0_i32_5 = arith.constant 0 : i32
    %c0_i32_6 = arith.constant 0 : i32
    %4 = tpu.memref_slice %arg0[%c0_i32_5, %c0_i32_6] : memref<1x2048xf32, #tpu.memory_space<any>> -> memref<1x2048xf32, #tpu.memory_space<any>>
    %c0_i32_7 = arith.constant 0 : i32
    %c0_i32_8 = arith.constant 0 : i32
    %5 = tpu.memref_slice %arg1[%c0_i32_7, %c0_i32_8] : memref<1x2048xf32, #tpu.memory_space<any>> -> memref<1x2048xf32, #tpu.memory_space<any>>
    %6 = tpu.memref_slice %arg2[%c0_i32_4] : memref<1x!tpu.dma_semaphore, #tpu.memory_space<semaphore_mem>> -> memref<1x!tpu.dma_semaphore, #tpu.memory_space<semaphore_mem>>
    %7 = tpu.memref_squeeze %6 : memref<1x!tpu.dma_semaphore, #tpu.memory_space<semaphore_mem>> -> memref<!tpu.dma_semaphore, #tpu.memory_space<semaphore_mem>>
    tpu.wait_dma2 semaphore(%7 : memref<!tpu.dma_semaphore, #tpu.memory_space<semaphore_mem>>) src(%4 : memref<1x2048xf32, #tpu.memory_space<any>>) dst(%5 : memref<1x2048xf32, #tpu.memory_space<any>>)
    return
  }
}

</mosaic_0001>

<llo_original>
// kernel: tpu_custom_call.1
$region0: #{tpu_custom_call.1}
  #allocation0 [shape = 'u32[]', space=smem, size = 0x4, offset = 0x4, fixed_abs, tag = 'smem constant byte address 0x4 - core index']
  #allocation1 [shape = 'u32[144,128]{1,0:T(1,128)}', space=vmem, size = 0x12000, scoped, tag = 'internal scratch']
  #allocation2 [shape = 's32[1]{0}', space=sflag, size = 0x4, scoped, tag = 'scratch operand']
  #allocation3 [shape = 's32[]', space=sflag, size = 0x4, offset = 0, fixed_abs, tag = 'sflag constant byte address 0x0 - dummy sync flag']
  #allocation4 [shape = 'u32[0]{0}', space=smem, size = 0, offset = 0, fixed_abs, tag = 'smem constant byte address 0x0 - null']
  %s0 = inlined_call_operand.hbm [shape: f32[1,2048], index: 0, kind: input, shape index: {}]
  %s1 = inlined_call_operand.hbm [shape: f32[1,2048], index: 1, kind: output, shape index: {}]
  %s2 = sld [smem:[#allocation0]]
  $region2: #{tpu_custom_call.1} parent=0
    _
  %s4 = ssub.s32 1, %s2
  %s5 = scalar_select 0, %s4, %s2
  %s7 = sshll.u32 1, 14
  %s8 = sxor.u32 4294967295, %s7
  %s11 = sshll.u32 3, 24
  %s12 = sxor.u32 4294967295, %s11
  %s13 = sand.u32 0, %s12
  %s15 = sor.u32 %s13, 0
  %18 = dma.general %s0, 256, %s1, [#allocation2], [#allocation3], [#allocation4], %s15, 0
  %s19 = smul.u32 1, 16
  %s20 = sshll.u32 %s19, 4
  %21 = dma.done [#allocation2], %s20
  %22 = vsyncmov [#allocation2]
  %s23 = vpop.sfrf %22
  %p24 = scmp.eq.s32.totalorder %s23, 0
  %p25 = pneg %p24
  %27 = shalt.err (%p25)

</llo_original>
